<compile_context>
chip_gen: v6e
topology: v6e:2x2x1
jax: 0.10.0
libtpu: 0.0.40
codegen_flags: <defaults>
</compile_context>

<pallas_src>
import math

import jax
import jax.numpy as jnp
from jax import lax
from jax.experimental import pallas as pl
from jax.experimental.pallas import tpu as pltpu

# ---- small, self-consistent config (n_embd % n_head == 0) ----
B, T, C, H = 2, 8, 32, 4        # batch, seq, n_embd, n_head
D = C // H                      # head dim
HIDDEN = 4 * C                  # FFN hidden
EPS = 1e-5                      # LayerNorm class hardcodes 1e-05
INV_SQRT2 = 1.0 / math.sqrt(2.0)
NEG_MASK = -1e30                # finite mask value (no NaN risk on masked rows)


def _layer_norm_f32(x, gamma):
    # x: (T, C), gamma: (1, C); bias=False in the module. Pure f32 elementwise.
    mean = jnp.mean(x, axis=-1, keepdims=True)
    xc = x - mean
    var = jnp.mean(xc * xc, axis=-1, keepdims=True)
    return xc * lax.rsqrt(var + EPS) * gamma


def transformer_block_kernel(x_ref, ln1_ref, wqkv_ref, wo_ref,
                             ln2_ref, wfi_ref, wout_ref, o_ref, y_scr):
    x = x_ref[...].astype(jnp.float32)                   # (T, C) residual stream
    gamma1 = ln1_ref[...].astype(jnp.float32)            # (1, C)
    gamma2 = ln2_ref[...].astype(jnp.float32)

    # ---------------- attention branch: x + Attn(LN(x)) ----------------
    h = _layer_norm_f32(x, gamma1)                       # f32
    # fused QKV projection: bf16 MXU inputs, f32 accumulate. 1/sqrt(D) is
    # already folded into the Q columns of wqkv (see prepare_params).
    qkv = jnp.dot(h.astype(jnp.bfloat16), wqkv_ref[...],
                  preferred_element_type=jnp.float32)    # (T, 3C)

    # Split into a leading head axis so attention runs as ONE H-batched einsum.
    # (At production C these lane slices are 128-aligned and effectively free.)
    def heads(which):
        base = which * C
        return jnp.stack(
            [qkv[:, base + i * D: base + (i + 1) * D] for i in range(H)],
            axis=0).astype(jnp.bfloat16)                 # (H, T, D)

    q, k, v = heads(0), heads(1), heads(2)

    s = jnp.einsum('hqd,hkd->hqk', q, k,
                   preferred_element_type=jnp.float32)   # (H, T, T)
    row = lax.broadcasted_iota(jnp.int32, (T, T), 0)
    col = lax.broadcasted_iota(jnp.int32, (T, T), 1)
    s = jnp.where((col <= row)[None, :, :], s, NEG_MASK)
    s = s - jnp.max(s, axis=-1, keepdims=True)
    p = jnp.exp(s)                                       # f32 softmax
    p = p * pl.reciprocal(jnp.sum(p, axis=-1, keepdims=True), approx=False)
    y = jnp.einsum('hqk,hkd->hqd', p.astype(jnp.bfloat16), v,
                   preferred_element_type=jnp.float32)   # (H, T, D)

    # Re-assemble heads on the lane axis via VMEM scratch -> single Wo matmul.
    for i in range(H):
        y_scr[:, i * D:(i + 1) * D] = y[i]
    att = jnp.dot(y_scr[...].astype(jnp.bfloat16), wo_ref[...],
                  preferred_element_type=jnp.float32)    # (T, C), K = C
    x = x + att                                          # residual (dropout p=0 -> no-op)

    # ---------------- feed-forward branch: x + FFN(LN(x)) ----------------
    h2 = _layer_norm_f32(x, gamma2)
    ff = jnp.dot(h2.astype(jnp.bfloat16), wfi_ref[...],
                 preferred_element_type=jnp.float32)     # (T, 4C)
    ff = 0.5 * ff * (1.0 + lax.erf(ff * INV_SQRT2))      # exact GELU, f32
    out = jnp.dot(ff.astype(jnp.bfloat16), wout_ref[...],
                  preferred_element_type=jnp.float32)    # (T, C)
    o_ref[...] = (x + out).astype(o_ref.dtype)
    # TODO(synk): for narrow C (<128) a lane-dense (N,128) output re-slab would
    # avoid masked partial stores; at production C (multiple of 128) the store
    # is already lane-dense.


def prepare_params(ln1, wq, wk, wv, wo, ln2, wfi, wout):
    """One-time parameter prep (done at init, NOT per forward call):
    fold 1/sqrt(D) into Wq, fuse Wq/Wk/Wv -> (C, 3C), cast matmul weights to
    bf16 (MXU fast path, half the VMEM), keep LayerNorm gains f32."""
    scale = 1.0 / math.sqrt(D)
    wqkv = jnp.concatenate([wq * scale, wk, wv], axis=1).astype(jnp.bfloat16)
    return (ln1.astype(jnp.float32), wqkv, wo.astype(jnp.bfloat16),
            ln2.astype(jnp.float32), wfi.astype(jnp.bfloat16),
            wout.astype(jnp.bfloat16))


def transformer_block(x, params):
    ln1, wqkv, wo, ln2, wfi, wout = params
    b, t, c = x.shape
    assert (t, c) == (T, C) and b == B
    return pl.pallas_call(
        transformer_block_kernel,
        out_shape=jax.ShapeDtypeStruct((b, t, c), x.dtype),
        grid=(b,),
        in_specs=[
            pl.BlockSpec((None, t, c), lambda i: (i, 0, 0)),      # x: one batch / step
            pl.BlockSpec((1, c), lambda i: (0, 0)),               # ln1 gain (resident)
            pl.BlockSpec((c, 3 * c), lambda i: (0, 0)),           # fused Wqkv (resident)
            pl.BlockSpec((c, c), lambda i: (0, 0)),               # Wo
            pl.BlockSpec((1, c), lambda i: (0, 0)),               # ln2 gain
            pl.BlockSpec((c, 4 * c), lambda i: (0, 0)),           # Wfi
            pl.BlockSpec((4 * c, c), lambda i: (0, 0)),           # Wout
        ],
        out_specs=pl.BlockSpec((None, t, c), lambda i: (i, 0, 0)),
        scratch_shapes=[pltpu.VMEM((t, c), jnp.float32)],         # head re-assembly
        compiler_params=pltpu.CompilerParams(
            dimension_semantics=("parallel",)),                   # v7x: one batch per TC
    )(x, ln1, wqkv, wo, ln2, wfi, wout)


# -------- pure-f32 JAX reference (same math as the PyTorch module) --------
def reference(x, ln1, wq, wk, wv, wo, ln2, wfi, wout):
    def ln(z, g):
        m = jnp.mean(z, -1, keepdims=True)
        zc = z - m
        v = jnp.mean(zc * zc, -1, keepdims=True)
        return zc * lax.rsqrt(v + EPS) * g

    h = ln(x, ln1)
    q = (h @ wq).reshape(B, T, H, D).transpose(0, 2, 1, 3)
    k = (h @ wk).reshape(B, T, H, D).transpose(0, 2, 1, 3)
    v = (h @ wv).reshape(B, T, H, D).transpose(0, 2, 1, 3)
    att = jnp.einsum("bhqd,bhkd->bhqk", q, k) / math.sqrt(D)
    mask = jnp.tril(jnp.ones((T, T), bool))
    att = jnp.where(mask, att, -jnp.inf)
    att = jax.nn.softmax(att, axis=-1)
    y = jnp.einsum("bhqk,bhkd->bhqd", att, v)
    y = y.transpose(0, 2, 1, 3).reshape(B, T, C) @ wo
    x = x + y
    h2 = ln(x, ln2)
    ff = h2 @ wfi
    ff = 0.5 * ff * (1.0 + lax.erf(ff * INV_SQRT2))
    return x + ff @ wout


if __name__ == "__main__":
    key = jax.random.PRNGKey(0)
    kx, k1, k2, k3, k4, k5, k6 = jax.random.split(key, 7)

    x = jax.random.normal(kx, (B, T, C), dtype=jnp.float32)

    # deterministic parameter init (LayerNorm weight = ones, bias=False everywhere)
    ln1 = jnp.ones((1, C), jnp.float32)
    ln2 = jnp.ones((1, C), jnp.float32)
    wq = 0.02 * jax.random.normal(k1, (C, C), jnp.float32)
    wk = 0.02 * jax.random.normal(k2, (C, C), jnp.float32)
    wv = 0.02 * jax.random.normal(k3, (C, C), jnp.float32)
    wo = 0.02 * jax.random.normal(k4, (C, C), jnp.float32)
    wfi = 0.02 * jax.random.normal(k5, (C, HIDDEN), jnp.float32)
    wout = 0.02 * jax.random.normal(k6, (HIDDEN, C), jnp.float32)

    params = prepare_params(ln1, wq, wk, wv, wo, ln2, wfi, wout)  # once, not per call
    out = transformer_block(x, params)
    out = jax.block_until_ready(out)

    ref = reference(x, ln1, wq, wk, wv, wo, ln2, wfi, wout)
    assert out.shape == (B, T, C)
    # bf16 MXU inputs vs a pure-f32 reference -> small (<~1e-3) absolute gaps;
    # tolerance set comfortably above that.
    assert jnp.allclose(out, ref, rtol=1e-2, atol=1e-2), "mismatch vs JAX reference"

    print("KERNEL_OK")
</pallas_src>

<mosaic_0001>
module attributes {stable_mosaic.version = 11 : i64} {
  func.func @transformer_block_kernel(%arg0: i32, %arg1: memref<1x8x32xf32, #tpu.memory_space<vmem>>, %arg2: memref<1x32xf32, #tpu.memory_space<vmem>>, %arg3: memref<32x96xbf16, #tpu.memory_space<vmem>>, %arg4: memref<32x32xbf16, #tpu.memory_space<vmem>>, %arg5: memref<1x32xf32, #tpu.memory_space<vmem>>, %arg6: memref<32x128xbf16, #tpu.memory_space<vmem>>, %arg7: memref<128x32xbf16, #tpu.memory_space<vmem>>, %arg8: memref<1x8x32xf32, #tpu.memory_space<vmem>>, %arg9: memref<8x32xf32, #tpu.memory_space<vmem>>) attributes {dimension_semantics = [#tpu.dimension_semantics<parallel>], iteration_bounds = array<i64: 2>, scalar_prefetch = 0 : i64, scratch_operands = 1 : i64, tpu.core_type = #tpu.core_type<tc>, window_params = [{transform_indices = @transform_0, window_bounds = array<i64: 1, 8, 32>}, {pipeline_mode = #tpu.pipeline_mode<synchronous>, transform_indices = @transform_1, window_bounds = array<i64: 1, 32>}, {pipeline_mode = #tpu.pipeline_mode<synchronous>, transform_indices = @transform_2, window_bounds = array<i64: 32, 96>}, {pipeline_mode = #tpu.pipeline_mode<synchronous>, transform_indices = @transform_3, window_bounds = array<i64: 32, 32>}, {pipeline_mode = #tpu.pipeline_mode<synchronous>, transform_indices = @transform_4, window_bounds = array<i64: 1, 32>}, {pipeline_mode = #tpu.pipeline_mode<synchronous>, transform_indices = @transform_5, window_bounds = array<i64: 32, 128>}, {pipeline_mode = #tpu.pipeline_mode<synchronous>, transform_indices = @transform_6, window_bounds = array<i64: 128, 32>}, {transform_indices = @transform_7, window_bounds = array<i64: 1, 8, 32>}]} {
    %c0 = arith.constant 0 : index
    %c0_0 = arith.constant 0 : index
    %c0_1 = arith.constant 0 : index
    %0 = vector.load %arg1[%c0, %c0_0, %c0_1] : memref<1x8x32xf32, #tpu.memory_space<vmem>>, vector<1x8x32xf32>
    %1 = vector.shape_cast %0 : vector<1x8x32xf32> to vector<8x32xf32>
    %c0_2 = arith.constant 0 : index
    %c0_3 = arith.constant 0 : index
    %2 = vector.load %arg2[%c0_2, %c0_3] : memref<1x32xf32, #tpu.memory_space<vmem>>, vector<1x32xf32>
    %c0_4 = arith.constant 0 : index
    %c0_5 = arith.constant 0 : index
    %3 = vector.load %arg5[%c0_4, %c0_5] : memref<1x32xf32, #tpu.memory_space<vmem>>, vector<1x32xf32>
    %cst = arith.constant dense<0.000000e+00> : vector<8xf32>
    %4 = vector.multi_reduction <add>, %1, %cst [1] : vector<8x32xf32> to vector<8xf32>
    %5 = vector.shape_cast %4 : vector<8xf32> to vector<8x1xf32>
    %cst_6 = arith.constant 3.200000e+01 : f32
    %6 = vector.broadcast %cst_6 : f32 to vector<8x1xf32>
    %7 = arith.divf %5, %6 : vector<8x1xf32>
    %8 = vector.broadcast %7 : vector<8x1xf32> to vector<8x32xf32>
    %9 = arith.subf %1, %8 : vector<8x32xf32>
    %10 = arith.mulf %9, %9 : vector<8x32xf32>
    %cst_7 = arith.constant dense<0.000000e+00> : vector<8xf32>
    %11 = vector.multi_reduction <add>, %10, %cst_7 [1] : vector<8x32xf32> to vector<8xf32>
    %12 = vector.shape_cast %11 : vector<8xf32> to vector<8x1xf32>
    %cst_8 = arith.constant 3.200000e+01 : f32
    %13 = vector.broadcast %cst_8 : f32 to vector<8x1xf32>
    %14 = arith.divf %12, %13 : vector<8x1xf32>
    %cst_9 = arith.constant 9.99999974E-6 : f32
    %15 = vector.broadcast %cst_9 : f32 to vector<8x1xf32>
    %16 = arith.addf %14, %15 : vector<8x1xf32>
    %17 = math.rsqrt %16 : vector<8x1xf32>
    %18 = vector.broadcast %17 : vector<8x1xf32> to vector<8x32xf32>
    %19 = arith.mulf %9, %18 : vector<8x32xf32>
    %20 = vector.broadcast %2 : vector<1x32xf32> to vector<8x32xf32>
    %21 = arith.mulf %19, %20 : vector<8x32xf32>
    %22 = arith.truncf %21 : vector<8x32xf32> to vector<8x32xbf16>
    %c0_10 = arith.constant 0 : index
    %c0_11 = arith.constant 0 : index
    %23 = vector.load %arg3[%c0_10, %c0_11] : memref<32x96xbf16, #tpu.memory_space<vmem>>, vector<32x96xbf16>
    %cst_12 = arith.constant dense<0.000000e+00> : vector<8x96xf32>
    %24 = tpu.matmul %22, %23, %cst_12 {dimension_numbers = #tpu.dot_dimension_numbers<[1], [0], [0], [1], [0, 0, 1, 1], [], []>} : vector<8x32xbf16>, vector<32x96xbf16>, vector<8x96xf32> -> vector<8x96xf32>
    %25 = vector.extract_strided_slice %24 {offsets = [0, 0], sizes = [8, 8], strides = [1, 1]} : vector<8x96xf32> to vector<8x8xf32>
    %26 = vector.extract_strided_slice %24 {offsets = [0, 8], sizes = [8, 8], strides = [1, 1]} : vector<8x96xf32> to vector<8x8xf32>
    %27 = vector.extract_strided_slice %24 {offsets = [0, 16], sizes = [8, 8], strides = [1, 1]} : vector<8x96xf32> to vector<8x8xf32>
    %28 = vector.extract_strided_slice %24 {offsets = [0, 24], sizes = [8, 8], strides = [1, 1]} : vector<8x96xf32> to vector<8x8xf32>
    %29 = vector.shape_cast %25 : vector<8x8xf32> to vector<1x8x8xf32>
    %30 = vector.shape_cast %26 : vector<8x8xf32> to vector<1x8x8xf32>
    %31 = vector.shape_cast %27 : vector<8x8xf32> to vector<1x8x8xf32>
    %32 = vector.shape_cast %28 : vector<8x8xf32> to vector<1x8x8xf32>
    %33 = tpu.concatenate %29, %30, %31, %32 in 0 : vector<1x8x8xf32>, vector<1x8x8xf32>, vector<1x8x8xf32>, vector<1x8x8xf32> -> vector<4x8x8xf32>
    %34 = arith.truncf %33 : vector<4x8x8xf32> to vector<4x8x8xbf16>
    %35 = vector.extract_strided_slice %24 {offsets = [0, 32], sizes = [8, 8], strides = [1, 1]} : vector<8x96xf32> to vector<8x8xf32>
    %36 = vector.extract_strided_slice %24 {offsets = [0, 40], sizes = [8, 8], strides = [1, 1]} : vector<8x96xf32> to vector<8x8xf32>
    %37 = vector.extract_strided_slice %24 {offsets = [0, 48], sizes = [8, 8], strides = [1, 1]} : vector<8x96xf32> to vector<8x8xf32>
    %38 = vector.extract_strided_slice %24 {offsets = [0, 56], sizes = [8, 8], strides = [1, 1]} : vector<8x96xf32> to vector<8x8xf32>
    %39 = vector.shape_cast %35 : vector<8x8xf32> to vector<1x8x8xf32>
    %40 = vector.shape_cast %36 : vector<8x8xf32> to vector<1x8x8xf32>
    %41 = vector.shape_cast %37 : vector<8x8xf32> to vector<1x8x8xf32>
    %42 = vector.shape_cast %38 : vector<8x8xf32> to vector<1x8x8xf32>
    %43 = tpu.concatenate %39, %40, %41, %42 in 0 : vector<1x8x8xf32>, vector<1x8x8xf32>, vector<1x8x8xf32>, vector<1x8x8xf32> -> vector<4x8x8xf32>
    %44 = arith.truncf %43 : vector<4x8x8xf32> to vector<4x8x8xbf16>
    %45 = vector.extract_strided_slice %24 {offsets = [0, 64], sizes = [8, 8], strides = [1, 1]} : vector<8x96xf32> to vector<8x8xf32>
    %46 = vector.extract_strided_slice %24 {offsets = [0, 72], sizes = [8, 8], strides = [1, 1]} : vector<8x96xf32> to vector<8x8xf32>
    %47 = vector.extract_strided_slice %24 {offsets = [0, 80], sizes = [8, 8], strides = [1, 1]} : vector<8x96xf32> to vector<8x8xf32>
    %48 = vector.extract_strided_slice %24 {offsets = [0, 88], sizes = [8, 8], strides = [1, 1]} : vector<8x96xf32> to vector<8x8xf32>
    %49 = vector.shape_cast %45 : vector<8x8xf32> to vector<1x8x8xf32>
    %50 = vector.shape_cast %46 : vector<8x8xf32> to vector<1x8x8xf32>
    %51 = vector.shape_cast %47 : vector<8x8xf32> to vector<1x8x8xf32>
    %52 = vector.shape_cast %48 : vector<8x8xf32> to vector<1x8x8xf32>
    %53 = tpu.concatenate %49, %50, %51, %52 in 0 : vector<1x8x8xf32>, vector<1x8x8xf32>, vector<1x8x8xf32>, vector<1x8x8xf32> -> vector<4x8x8xf32>
    %54 = arith.truncf %53 : vector<4x8x8xf32> to vector<4x8x8xbf16>
    "tpu.trace_start"() <{level = 10 : i32, message = "hqd,hkd->hqk"}> : () -> ()
    %cst_13 = arith.constant dense<0.000000e+00> : vector<4x8x8xf32>
    %55 = tpu.matmul %34, %44, %cst_13 {dimension_numbers = #tpu.dot_dimension_numbers<[2], [2], [1], [1], [0, 0, 0, 1, 1, 1], [0], [0]>} : vector<4x8x8xbf16>, vector<4x8x8xbf16>, vector<4x8x8xf32> -> vector<4x8x8xf32>
    "tpu.trace_stop"() : () -> ()
    %56 = tpu.iota {dimensions = array<i32: 0>} : vector<8x8xi32>
    %57 = tpu.iota {dimensions = array<i32: 1>} : vector<8x8xi32>
    %58 = arith.cmpi sle, %57, %56 : vector<8x8xi32>
    %59 = vector.shape_cast %58 : vector<8x8xi1> to vector<1x8x8xi1>
    %cst_14 = arith.constant -1.000000e+30 : f32
    %60 = vector.shape_cast %59 : vector<1x8x8xi1> to vector<1x8x8xi1>
    %61 = vector.broadcast %60 : vector<1x8x8xi1> to vector<4x8x8xi1>
    %62 = vector.broadcast %cst_14 : f32 to vector<4x8x8xf32>
    %63 = arith.select %61, %55, %62 : vector<4x8x8xi1>, vector<4x8x8xf32>
    %cst_15 = arith.constant dense<0xFF800000> : vector<4x8xf32>
    %64 = vector.multi_reduction <maximumf>, %63, %cst_15 [2] : vector<4x8x8xf32> to vector<4x8xf32>
    %65 = vector.shape_cast %64 : vector<4x8xf32> to vector<4x8x1xf32>
    %66 = vector.broadcast %65 : vector<4x8x1xf32> to vector<4x8x8xf32>
    %67 = arith.subf %63, %66 : vector<4x8x8xf32>
    %68 = math.exp %67 : vector<4x8x8xf32>
    %cst_16 = arith.constant dense<0.000000e+00> : vector<4x8xf32>
    %69 = vector.multi_reduction <add>, %68, %cst_16 [2] : vector<4x8x8xf32> to vector<4x8xf32>
    %70 = vector.shape_cast %69 : vector<4x8xf32> to vector<4x8x1xf32>
    %71 = tpu.reciprocal %70 : vector<4x8x1xf32> -> vector<4x8x1xf32>
    %72 = vector.broadcast %71 : vector<4x8x1xf32> to vector<4x8x8xf32>
    %73 = arith.mulf %68, %72 : vector<4x8x8xf32>
    %74 = arith.truncf %73 : vector<4x8x8xf32> to vector<4x8x8xbf16>
    "tpu.trace_start"() <{level = 10 : i32, message = "hqk,hkd->hqd"}> : () -> ()
    %cst_17 = arith.constant dense<0.000000e+00> : vector<4x8x8xf32>
    %75 = tpu.matmul %74, %54, %cst_17 {dimension_numbers = #tpu.dot_dimension_numbers<[2], [1], [1], [2], [0, 0, 0, 1, 1, 2], [0], [0]>} : vector<4x8x8xbf16>, vector<4x8x8xbf16>, vector<4x8x8xf32> -> vector<4x8x8xf32>
    "tpu.trace_stop"() : () -> ()
    %76 = vector.extract_strided_slice %75 {offsets = [0, 0, 0], sizes = [1, 8, 8], strides = [1, 1, 1]} : vector<4x8x8xf32> to vector<1x8x8xf32>
    %77 = vector.shape_cast %76 : vector<1x8x8xf32> to vector<8x8xf32>
    %c0_18 = arith.constant 0 : index
    %c0_19 = arith.constant 0 : index
    %78 = vector.load %arg9[%c0_18, %c0_19] : memref<8x32xf32, #tpu.memory_space<vmem>>, vector<8x8xf32>
    tpu.vector_store %arg9[%c0_18, %c0_19], %77 {strides = array<i32>} : memref<8x32xf32, #tpu.memory_space<vmem>>, vector<8x8xf32>,
    %79 = vector.extract_strided_slice %75 {offsets = [1, 0, 0], sizes = [1, 8, 8], strides = [1, 1, 1]} : vector<4x8x8xf32> to vector<1x8x8xf32>
    %80 = vector.shape_cast %79 : vector<1x8x8xf32> to vector<8x8xf32>
    %c0_20 = arith.constant 0 : index
    %c8 = arith.constant 8 : index
    %81 = vector.load %arg9[%c0_20, %c8] : memref<8x32xf32, #tpu.memory_space<vmem>>, vector<8x8xf32>
    tpu.vector_store %arg9[%c0_20, %c8], %80 {strides = array<i32>} : memref<8x32xf32, #tpu.memory_space<vmem>>, vector<8x8xf32>,
    %82 = vector.extract_strided_slice %75 {offsets = [2, 0, 0], sizes = [1, 8, 8], strides = [1, 1, 1]} : vector<4x8x8xf32> to vector<1x8x8xf32>
    %83 = vector.shape_cast %82 : vector<1x8x8xf32> to vector<8x8xf32>
    %c0_21 = arith.constant 0 : index
    %c16 = arith.constant 16 : index
    %84 = vector.load %arg9[%c0_21, %c16] : memref<8x32xf32, #tpu.memory_space<vmem>>, vector<8x8xf32>
    tpu.vector_store %arg9[%c0_21, %c16], %83 {strides = array<i32>} : memref<8x32xf32, #tpu.memory_space<vmem>>, vector<8x8xf32>,
    %85 = vector.extract_strided_slice %75 {offsets = [3, 0, 0], sizes = [1, 8, 8], strides = [1, 1, 1]} : vector<4x8x8xf32> to vector<1x8x8xf32>
    %86 = vector.shape_cast %85 : vector<1x8x8xf32> to vector<8x8xf32>
    %c0_22 = arith.constant 0 : index
    %c24 = arith.constant 24 : index
    %87 = vector.load %arg9[%c0_22, %c24] : memref<8x32xf32, #tpu.memory_space<vmem>>, vector<8x8xf32>
    tpu.vector_store %arg9[%c0_22, %c24], %86 {strides = array<i32>} : memref<8x32xf32, #tpu.memory_space<vmem>>, vector<8x8xf32>,
    %c0_23 = arith.constant 0 : index
    %c0_24 = arith.constant 0 : index
    %88 = vector.load %arg9[%c0_23, %c0_24] : memref<8x32xf32, #tpu.memory_space<vmem>>, vector<8x32xf32>
    %89 = arith.truncf %88 : vector<8x32xf32> to vector<8x32xbf16>
    %c0_25 = arith.constant 0 : index
    %c0_26 = arith.constant 0 : index
    %90 = vector.load %arg4[%c0_25, %c0_26] : memref<32x32xbf16, #tpu.memory_space<vmem>>, vector<32x32xbf16>
    %cst_27 = arith.constant dense<0.000000e+00> : vector<8x32xf32>
    %91 = tpu.matmul %89, %90, %cst_27 {dimension_numbers = #tpu.dot_dimension_numbers<[1], [0], [0], [1], [0, 0, 1, 1], [], []>} : vector<8x32xbf16>, vector<32x32xbf16>, vector<8x32xf32> -> vector<8x32xf32>
    %92 = arith.addf %1, %91 : vector<8x32xf32>
    %cst_28 = arith.constant dense<0.000000e+00> : vector<8xf32>
    %93 = vector.multi_reduction <add>, %92, %cst_28 [1] : vector<8x32xf32> to vector<8xf32>
    %94 = vector.shape_cast %93 : vector<8xf32> to vector<8x1xf32>
    %cst_29 = arith.constant 3.200000e+01 : f32
    %95 = vector.broadcast %cst_29 : f32 to vector<8x1xf32>
    %96 = arith.divf %94, %95 : vector<8x1xf32>
    %97 = vector.broadcast %96 : vector<8x1xf32> to vector<8x32xf32>
    %98 = arith.subf %92, %97 : vector<8x32xf32>
    %99 = arith.mulf %98, %98 : vector<8x32xf32>
    %cst_30 = arith.constant dense<0.000000e+00> : vector<8xf32>
    %100 = vector.multi_reduction <add>, %99, %cst_30 [1] : vector<8x32xf32> to vector<8xf32>
    %101 = vector.shape_cast %100 : vector<8xf32> to vector<8x1xf32>
    %cst_31 = arith.constant 3.200000e+01 : f32
    %102 = vector.broadcast %cst_31 : f32 to vector<8x1xf32>
    %103 = arith.divf %101, %102 : vector<8x1xf32>
    %cst_32 = arith.constant 9.99999974E-6 : f32
    %104 = vector.broadcast %cst_32 : f32 to vector<8x1xf32>
    %105 = arith.addf %103, %104 : vector<8x1xf32>
    %106 = math.rsqrt %105 : vector<8x1xf32>
    %107 = vector.broadcast %106 : vector<8x1xf32> to vector<8x32xf32>
    %108 = arith.mulf %98, %107 : vector<8x32xf32>
    %109 = vector.broadcast %3 : vector<1x32xf32> to vector<8x32xf32>
    %110 = arith.mulf %108, %109 : vector<8x32xf32>
    %111 = arith.truncf %110 : vector<8x32xf32> to vector<8x32xbf16>
    %c0_33 = arith.constant 0 : index
    %c0_34 = arith.constant 0 : index
    %112 = vector.load %arg6[%c0_33, %c0_34] : memref<32x128xbf16, #tpu.memory_space<vmem>>, vector<32x128xbf16>
    %cst_35 = arith.constant dense<0.000000e+00> : vector<8x128xf32>
    %113 = tpu.matmul %111, %112, %cst_35 {dimension_numbers = #tpu.dot_dimension_numbers<[1], [0], [0], [1], [0, 0, 1, 1], [], []>} : vector<8x32xbf16>, vector<32x128xbf16>, vector<8x128xf32> -> vector<8x128xf32>
    %cst_36 = arith.constant 5.000000e-01 : f32
    %114 = vector.broadcast %cst_36 : f32 to vector<8x128xf32>
    %115 = arith.mulf %114, %113 : vector<8x128xf32>
    %cst_37 = arith.constant 0.707106769 : f32
    %116 = vector.broadcast %cst_37 : f32 to vector<8x128xf32>
    %117 = arith.mulf %113, %116 : vector<8x128xf32>
    %118 = math.erf %117 : vector<8x128xf32>
    %cst_38 = arith.constant 1.000000e+00 : f32
    %119 = vector.broadcast %cst_38 : f32 to vector<8x128xf32>
    %120 = arith.addf %119, %118 : vector<8x128xf32>
    %121 = arith.mulf %115, %120 : vector<8x128xf32>
    %122 = arith.truncf %121 : vector<8x128xf32> to vector<8x128xbf16>
    %c0_39 = arith.constant 0 : index
    %c0_40 = arith.constant 0 : index
    %123 = vector.load %arg7[%c0_39, %c0_40] : memref<128x32xbf16, #tpu.memory_space<vmem>>, vector<128x32xbf16>
    %cst_41 = arith.constant dense<0.000000e+00> : vector<8x32xf32>
    %124 = tpu.matmul %122, %123, %cst_41 {dimension_numbers = #tpu.dot_dimension_numbers<[1], [0], [0], [1], [0, 0, 1, 1], [], []>} : vector<8x128xbf16>, vector<128x32xbf16>, vector<8x32xf32> -> vector<8x32xf32>
    %125 = arith.addf %92, %124 : vector<8x32xf32>
    %c0_42 = arith.constant 0 : index
    %c0_43 = arith.constant 0 : index
    %c0_44 = arith.constant 0 : index
    %126 = vector.load %arg8[%c0_42, %c0_43, %c0_44] : memref<1x8x32xf32, #tpu.memory_space<vmem>>, vector<1x8x32xf32>
    %127 = vector.shape_cast %126 : vector<1x8x32xf32> to vector<8x32xf32>
    %128 = vector.shape_cast %125 : vector<8x32xf32> to vector<1x8x32xf32>
    tpu.vector_store %arg8[%c0_42, %c0_43, %c0_44], %128 {strides = array<i32>} : memref<1x8x32xf32, #tpu.memory_space<vmem>>, vector<1x8x32xf32>,
    return
  }
  func.func @transform_0(%arg0: i32) -> (i32, i32, i32) {
    %c0_i32 = arith.constant 0 : i32
    %c0_i32_0 = arith.constant 0 : i32
    %c0_i32_1 = arith.constant 0 : i32
    return %arg0, %c0_i32, %c0_i32_0 : i32, i32, i32
  }
  func.func @transform_1(%arg0: i32) -> (i32, i32) {
    %c0_i32 = arith.constant 0 : i32
    %c0_i32_0 = arith.constant 0 : i32
    %c0_i32_1 = arith.constant 0 : i32
    return %c0_i32, %c0_i32_0 : i32, i32
  }
  func.func @transform_2(%arg0: i32) -> (i32, i32) {
    %c0_i32 = arith.constant 0 : i32
    %c0_i32_0 = arith.constant 0 : i32
    %c0_i32_1 = arith.constant 0 : i32
    return %c0_i32, %c0_i32_0 : i32, i32
  }
  func.func @transform_3(%arg0: i32) -> (i32, i32) {
    %c0_i32 = arith.constant 0 : i32
    %c0_i32_0 = arith.constant 0 : i32
    %c0_i32_1 = arith.constant 0 : i32
    return %c0_i32, %c0_i32_0 : i32, i32
  }
  func.func @transform_4(%arg0: i32) -> (i32, i32) {
    %c0_i32 = arith.constant 0 : i32
    %c0_i32_0 = arith.constant 0 : i32
    %c0_i32_1 = arith.constant 0 : i32
    return %c0_i32, %c0_i32_0 : i32, i32
  }
  func.func @transform_5(%arg0: i32) -> (i32, i32) {
    %c0_i32 = arith.constant 0 : i32
    %c0_i32_0 = arith.constant 0 : i32
    %c0_i32_1 = arith.constant 0 : i32
    return %c0_i32, %c0_i32_0 : i32, i32
  }
  func.func @transform_6(%arg0: i32) -> (i32, i32) {
    %c0_i32 = arith.constant 0 : i32
    %c0_i32_0 = arith.constant 0 : i32
    %c0_i32_1 = arith.constant 0 : i32
    return %c0_i32, %c0_i32_0 : i32, i32
  }
  func.func @transform_7(%arg0: i32) -> (i32, i32, i32) {
    %c0_i32 = arith.constant 0 : i32
    %c0_i32_0 = arith.constant 0 : i32
    %c0_i32_1 = arith.constant 0 : i32
    return %arg0, %c0_i32, %c0_i32_0 : i32, i32, i32
  }
}

</mosaic_0001>

<llo_original>
// kernel: tpu_custom_call.1
$region0: #{tpu_custom_call.1}
  #allocation0 [shape = 'u32[]', space=smem, size = 0x4, offset = 0x4, fixed_abs, tag = 'smem constant byte address 0x4 - core index']
  #allocation1 [shape = 'u32[144,128]{1,0:T(1,128)}', space=vmem, size = 0x12000, scoped, tag = 'internal scratch']
  #allocation2 [shape = 'f32[8,32]{1,0:T(8,128)}', space=vmem, size = 0x1000, scoped, tag = 'scratch operand']
  %s0 = inlined_call_operand.vmem [shape: f32[2,8,32], index: 0, kind: input, shape index: {}]
  %s1 = inlined_call_operand.vmem [shape: f32[1,32], index: 1, kind: input, shape index: {}]
  %s2 = inlined_call_operand.vmem [shape: bf16[32,96], index: 2, kind: input, shape index: {}]
  %s3 = inlined_call_operand.vmem [shape: bf16[32,32], index: 3, kind: input, shape index: {}]
  %s4 = inlined_call_operand.vmem [shape: f32[1,32], index: 4, kind: input, shape index: {}]
  %s5 = inlined_call_operand.vmem [shape: bf16[32,128], index: 5, kind: input, shape index: {}]
  %s6 = inlined_call_operand.vmem [shape: bf16[128,32], index: 6, kind: input, shape index: {}]
  %s7 = inlined_call_operand.hbm [shape: f32[2,8,32], index: 7, kind: output, shape index: {}]
  %s8 = sld [smem:[#allocation0]]
  $region61: #{tpu_custom_call.1} parent=0
    _
  %s10 = ssub.s32 1, %s8
  %s11 = scalar_select 0, %s10, %s8
  $region1: #{tpu_custom_call.1} parent=0
    #allocation3 [shape = 'u8[8192]{0}', space=vmem, size = 0x2000, scoped, tag = 'output window, operand 0']
    #allocation4 [shape = 's32[2]{0}', space=sflag, size = 0x8, scoped, tag = 'scoped memory for tpu_custom_call.1']
    %12 = vsyncpa [#allocation4], 0
    %s13 = scalar_lea.sflag [#allocation4], 1
    %14 = vsyncpa %s13, 0
    loop: start=0, step=1, limit=4
    $region2: #{tpu_custom_call.1} parent=1 // loop_pre_header
      _
    $region3: #{tpu_custom_call.1} parent=1 // loop_header
      %s16 = sphi 0, %s20
      %p17 = scmp.ge.s32.totalorder %s16, 4
      %s26 = sphi 0, %s28
      %s29 = sphi 0, %s26
      %s30 = sphi 0, %s29
      %s46 = sphi 0, %s30
      %s50 = sphi 0, %s50
      %s52 = sphi 0, %s50
      %s53 = sphi 0, %s52
      %s67 = sphi 0, %s53
      %s71 = sphi 0, %s71
      %s73 = sphi 0, %s71
      %s74 = sphi 0, %s73
      %s88 = sphi 0, %s74
      %s92 = sphi 0, %s92
      %s94 = sphi 0, %s92
      %s95 = sphi 0, %s94
      %s109 = sphi 0, %s95
      %s113 = sphi 0, %s113
      %s115 = sphi 0, %s113
      %s116 = sphi 0, %s115
      %s130 = sphi 0, %s116
      %s134 = sphi 0, %s134
      %s136 = sphi 0, %s134
      %s137 = sphi 0, %s136
      %s151 = sphi 0, %s137
      %s155 = sphi 0, %s155
      %s157 = sphi 0, %s155
      %s158 = sphi 0, %s157
      %s172 = sphi 0, %s158
      %s178 = sphi 0, %s180
      %s181 = sphi 0, %s178
      %s182 = sphi 0, %s181
      %s198 = sphi 0, %s182
    $region4: #{tpu_custom_call.1} parent=1 // loop_header_branch
      %19 = sbr.rel (%p17) target = $region8
    $region5: #{tpu_custom_call.1} parent=1 // loop_body
      %s21 = ssub.s32 %s16, 1
      %s22 = ssub.s32 %s16, 2
      %s23 = sadd.s32 %s16, 1
      %s24 = ssub.s32 %s16, %s23
      %p25 = scmp.eq.s32.totalorder %s24, 0
      %s27 = sadd.s32 %s26, 1
      %s28 = scalar_select %p25, %s26, %s27
      %p31 = pneg %p25
      %p32 = scmp.eq.s32.totalorder %s16, 1
      %p33 = por %p31, %p32
      %p34 = scmp.ne.s32.totalorder %s26, %s29
      %p35 = scmp.eq.s32.totalorder %s16, 0
      %p36 = por %p34, %p35
      %p37 = scmp.ne.s32.totalorder %s26, %s29
      %p38 = scmp.eq.s32.totalorder %s21, 1
      %p39 = por %p37, %p38
      %p40 = scmp.ne.s32.totalorder %s29, %s30
      %p41 = scmp.eq.s32.totalorder %s21, 0
      %p42 = por %p40, %p41
      %p43 = scmp.ne.s32.totalorder %s29, %s30
      %p44 = scmp.eq.s32.totalorder %s22, 1
      %p45 = por %p43, %p44
      %p47 = scmp.ne.s32.totalorder %s30, %s46
      %p48 = scmp.eq.s32.totalorder %s22, 0
      %p49 = por %p47, %p48
      %s51 = sadd.s32 %s50, 1
      %p54 = scmp.eq.s32.totalorder %s16, 1
      %p55 = scmp.ne.s32.totalorder %s50, %s52
      %p56 = scmp.eq.s32.totalorder %s16, 0
      %p57 = por %p55, %p56
      %p58 = scmp.ne.s32.totalorder %s50, %s52
      %p59 = scmp.eq.s32.totalorder %s21, 1
      %p60 = por %p58, %p59
      %p61 = scmp.ne.s32.totalorder %s52, %s53
      %p62 = scmp.eq.s32.totalorder %s21, 0
      %p63 = por %p61, %p62
      %p64 = scmp.ne.s32.totalorder %s52, %s53
      %p65 = scmp.eq.s32.totalorder %s22, 1
      %p66 = por %p64, %p65
      %p68 = scmp.ne.s32.totalorder %s53, %s67
      %p69 = scmp.eq.s32.totalorder %s22, 0
      %p70 = por %p68, %p69
      %s72 = sadd.s32 %s71, 1
      %p75 = scmp.eq.s32.totalorder %s16, 1
      %p76 = scmp.ne.s32.totalorder %s71, %s73
      %p77 = scmp.eq.s32.totalorder %s16, 0
      %p78 = por %p76, %p77
      %p79 = scmp.ne.s32.totalorder %s71, %s73
      %p80 = scmp.eq.s32.totalorder %s21, 1
      %p81 = por %p79, %p80
      %p82 = scmp.ne.s32.totalorder %s73, %s74
      %p83 = scmp.eq.s32.totalorder %s21, 0
      %p84 = por %p82, %p83
      %p85 = scmp.ne.s32.totalorder %s73, %s74
      %p86 = scmp.eq.s32.totalorder %s22, 1
      %p87 = por %p85, %p86
      %p89 = scmp.ne.s32.totalorder %s74, %s88
      %p90 = scmp.eq.s32.totalorder %s22, 0
      %p91 = por %p89, %p90
      %s93 = sadd.s32 %s92, 1
      %p96 = scmp.eq.s32.totalorder %s16, 1
      %p97 = scmp.ne.s32.totalorder %s92, %s94
      %p98 = scmp.eq.s32.totalorder %s16, 0
      %p99 = por %p97, %p98
      %p100 = scmp.ne.s32.totalorder %s92, %s94
      %p101 = scmp.eq.s32.totalorder %s21, 1
      %p102 = por %p100, %p101
      %p103 = scmp.ne.s32.totalorder %s94, %s95
      %p104 = scmp.eq.s32.totalorder %s21, 0
      %p105 = por %p103, %p104
      %p106 = scmp.ne.s32.totalorder %s94, %s95
      %p107 = scmp.eq.s32.totalorder %s22, 1
      %p108 = por %p106, %p107
      %p110 = scmp.ne.s32.totalorder %s95, %s109
      %p111 = scmp.eq.s32.totalorder %s22, 0
      %p112 = por %p110, %p111
      %s114 = sadd.s32 %s113, 1
      %p117 = scmp.eq.s32.totalorder %s16, 1
      %p118 = scmp.ne.s32.totalorder %s113, %s115
      %p119 = scmp.eq.s32.totalorder %s16, 0
      %p120 = por %p118, %p119
      %p121 = scmp.ne.s32.totalorder %s113, %s115
      %p122 = scmp.eq.s32.totalorder %s21, 1
      %p123 = por %p121, %p122
      %p124 = scmp.ne.s32.totalorder %s115, %s116
      %p125 = scmp.eq.s32.totalorder %s21, 0
      %p126 = por %p124, %p125
      %p127 = scmp.ne.s32.totalorder %s115, %s116
      %p128 = scmp.eq.s32.totalorder %s22, 1
      %p129 = por %p127, %p128
      %p131 = scmp.ne.s32.totalorder %s116, %s130
      %p132 = scmp.eq.s32.totalorder %s22, 0
      %p133 = por %p131, %p132
      %s135 = sadd.s32 %s134, 1
      %p138 = scmp.eq.s32.totalorder %s16, 1
      %p139 = scmp.ne.s32.totalorder %s134, %s136
      %p140 = scmp.eq.s32.totalorder %s16, 0
      %p141 = por %p139, %p140
      %p142 = scmp.ne.s32.totalorder %s134, %s136
      %p143 = scmp.eq.s32.totalorder %s21, 1
      %p144 = por %p142, %p143
      %p145 = scmp.ne.s32.totalorder %s136, %s137
      %p146 = scmp.eq.s32.totalorder %s21, 0
      %p147 = por %p145, %p146
      %p148 = scmp.ne.s32.totalorder %s136, %s137
      %p149 = scmp.eq.s32.totalorder %s22, 1
      %p150 = por %p148, %p149
      %p152 = scmp.ne.s32.totalorder %s137, %s151
      %p153 = scmp.eq.s32.totalorder %s22, 0
      %p154 = por %p152, %p153
      %s156 = sadd.s32 %s155, 1
      %p159 = scmp.eq.s32.totalorder %s16, 1
      %p160 = scmp.ne.s32.totalorder %s155, %s157
      %p161 = scmp.eq.s32.totalorder %s16, 0
      %p162 = por %p160, %p161
      %p163 = scmp.ne.s32.totalorder %s155, %s157
      %p164 = scmp.eq.s32.totalorder %s21, 1
      %p165 = por %p163, %p164
      %p166 = scmp.ne.s32.totalorder %s157, %s158
      %p167 = scmp.eq.s32.totalorder %s21, 0
      %p168 = por %p166, %p167
      %p169 = scmp.ne.s32.totalorder %s157, %s158
      %p170 = scmp.eq.s32.totalorder %s22, 1
      %p171 = por %p169, %p170
      %p173 = scmp.ne.s32.totalorder %s158, %s172
      %p174 = scmp.eq.s32.totalorder %s22, 0
      %p175 = por %p173, %p174
      %s176 = ssub.s32 %s16, %s23
      %p177 = scmp.eq.s32.totalorder %s176, 0
      %s179 = sadd.s32 %s178, 1
      %s180 = scalar_select %p177, %s178, %s179
      %p183 = pneg %p177
      %p184 = scmp.eq.s32.totalorder %s16, 1
      %p185 = por %p183, %p184
      %p186 = scmp.ne.s32.totalorder %s178, %s181
      %p187 = scmp.eq.s32.totalorder %s16, 0
      %p188 = por %p186, %p187
      %p189 = scmp.ne.s32.totalorder %s178, %s181
      %p190 = scmp.eq.s32.totalorder %s21, 1
      %p191 = por %p189, %p190
      %p192 = scmp.ne.s32.totalorder %s181, %s182
      %p193 = scmp.eq.s32.totalorder %s21, 0
      %p194 = por %p192, %p193
      %p195 = scmp.ne.s32.totalorder %s181, %s182
      %p196 = scmp.eq.s32.totalorder %s22, 1
      %p197 = por %p195, %p196
      %p199 = scmp.ne.s32.totalorder %s182, %s198
      %p200 = scmp.eq.s32.totalorder %s22, 0
      %p201 = por %p199, %p200
      %p202 = scmp.le.s32.totalorder 1, %s16
      %p203 = scmp.lt.s32.totalorder %s16, 3
      %p204 = pnand %p202, %p203
      %p205 = pneg %p204
      // Predicated region
      $region9: #{tpu_custom_call.1} parent=5 // pred_check
        _
      $region10: #{tpu_custom_call.1} parent=5 // pred_check_branch
        %207 = sbr.rel (%p204) target = $region12
      $region11: #{tpu_custom_call.1} parent=5 // pred_region
        %s208 = ssub.s32 %s16, 1
        // Predicated region
        $region13: #{tpu_custom_call.1} parent=11 // pred_check
          %p209 = pneg %p63
        $region14: #{tpu_custom_call.1} parent=11 // pred_check_branch
          %211 = sbr.rel (%p209) target = $region16
        $region15: #{tpu_custom_call.1} parent=11 // pred_region
          _
        $region16: #{tpu_custom_call.1} parent=11 // pred_fallthru
          _
        // Predicated region
        $region17: #{tpu_custom_call.1} parent=11 // pred_check
          %p212 = pneg %p84
        $region18: #{tpu_custom_call.1} parent=11 // pred_check_branch
          %214 = sbr.rel (%p212) target = $region20
        $region19: #{tpu_custom_call.1} parent=11 // pred_region
          _
        $region20: #{tpu_custom_call.1} parent=11 // pred_fallthru
          _
        // Predicated region
        $region21: #{tpu_custom_call.1} parent=11 // pred_check
          %p215 = pneg %p105
        $region22: #{tpu_custom_call.1} parent=11 // pred_check_branch
          %217 = sbr.rel (%p215) target = $region24
        $region23: #{tpu_custom_call.1} parent=11 // pred_region
          _
        $region24: #{tpu_custom_call.1} parent=11 // pred_fallthru
          _
        // Predicated region
        $region25: #{tpu_custom_call.1} parent=11 // pred_check
          %p218 = pneg %p126
        $region26: #{tpu_custom_call.1} parent=11 // pred_check_branch
          %220 = sbr.rel (%p218) target = $region28
        $region27: #{tpu_custom_call.1} parent=11 // pred_region
          _
        $region28: #{tpu_custom_call.1} parent=11 // pred_fallthru
          _
        // Predicated region
        $region29: #{tpu_custom_call.1} parent=11 // pred_check
          %p221 = pneg %p147
        $region30: #{tpu_custom_call.1} parent=11 // pred_check_branch
          %223 = sbr.rel (%p221) target = $region32
        $region31: #{tpu_custom_call.1} parent=11 // pred_region
          _
        $region32: #{tpu_custom_call.1} parent=11 // pred_fallthru
          _
        // Predicated region
        $region33: #{tpu_custom_call.1} parent=11 // pred_check
          %p224 = pneg %p168
        $region34: #{tpu_custom_call.1} parent=11 // pred_check_branch
          %226 = sbr.rel (%p224) target = $region36
        $region35: #{tpu_custom_call.1} parent=11 // pred_region
          _
        $region36: #{tpu_custom_call.1} parent=11 // pred_fallthru
          _
      $region12: #{tpu_custom_call.1} parent=5 // pred_fallthru
        _
      %p227 = scmp.lt.s32.totalorder %s16, 2
      // Predicated region
      $region37: #{tpu_custom_call.1} parent=5 // pred_check
        %p228 = pneg %p227
      $region38: #{tpu_custom_call.1} parent=5 // pred_check_branch
        %230 = sbr.rel (%p228) target = $region40
      $region39: #{tpu_custom_call.1} parent=5 // pred_region
        // Predicated region
        $region41: #{tpu_custom_call.1} parent=39 // pred_check
          %p231 = pneg %p36
        $region42: #{tpu_custom_call.1} parent=39 // pred_check_branch
          %233 = sbr.rel (%p231) target = $region44
        $region43: #{tpu_custom_call.1} parent=39 // pred_region
          %p234 = scmp.lt.s32.totalorder %s16, 1
          %s235 = scalar_select %p234, %s16, 1
          %s236 = smul.addr %s235, 8
          %s237 = scalar_lea.vmem %s0, %s236
        $region44: #{tpu_custom_call.1} parent=39 // pred_fallthru
          _
      $region40: #{tpu_custom_call.1} parent=5 // pred_fallthru
        _
      %p238 = scmp.le.s32.totalorder 1, %s16
      %p239 = scmp.lt.s32.totalorder %s16, 3
      %p240 = pnand %p238, %p239
      %p241 = pneg %p240
      // Predicated region
      $region45: #{tpu_custom_call.1} parent=5 // pred_check
        _
      $region46: #{tpu_custom_call.1} parent=5 // pred_check_branch
        %243 = sbr.rel (%p240) target = $region48
      $region47: #{tpu_custom_call.1} parent=5 // pred_region
        %s244 = ssub.s32 %s16, 1
        %p245 = scmp.lt.s32.totalorder %s21, 1
        %s246 = scalar_select %p245, %s21, 1
        %s247 = smul.addr %s246, 8
        %s248 = scalar_lea.vmem %s0, %s247
        %p249 = pneg %p42
        %p250 = pneg %p39
        %p251 = pneg %p63
        %p252 = pneg %p60
        %p253 = pneg %p84
        %p254 = pneg %p81
        %p255 = pneg %p105
        %p256 = pneg %p102
        %p257 = pneg %p126
        %p258 = pneg %p123
        %p259 = pneg %p147
        %p260 = pneg %p144
        %p261 = pneg %p168
        %p262 = pneg %p165
        %p263 = pneg %p194
        %p264 = pneg %p191
        %s265 = sand.u32 %s181, 1
        %s266 = scalar_lea.sflag [#allocation4], %s265
        %s267 = sand.u32 %s181, 1
        %s268 = smul.addr %s267, 8
        %s269 = scalar_lea.vmem [#allocation3], %s268
        %p270 = scmp.lt.s32.totalorder %s21, 1
        %s271 = scalar_select %p270, %s21, 1
        %s272 = smul.addr %s271, 8
        %s273 = scalar_lea.vmem %s0, %s272
        %v275 = vld [vmem:[%s273] sm:$0xff]
        %v276 = vld [vmem:[%s1] sm:$0x1]
        %v277 = vld [vmem:[%s4] sm:$0x1]
        %vm278 = vcmask 261120
        %v279 = vsel %vm278, %v275, 0.0
        %280 = vadd.xlane.f32.xlu0 %v279
        %v281 = vpop.xlane.xlu0 %280
        %v282 = vrcp.pop 32.0
        %v283 = vmul.f32 %v281, %v282
        %v284 = vsub.f32 %v275, %v283
        %v285 = vmul.f32 %v284, %v284
        %v286 = vsel %vm278, %v285, 0.0
        %287 = vadd.xlane.f32.xlu0 %v286
        %v288 = vpop.xlane.xlu0 %287
        %v289 = vmul.f32 %v288, %v282
        %v290 = vadd.f32 %v289, 1e-05
        %v291 = vrsqrt.pop %v290
        %v292 = vmul.f32 %v284, %v291
        %v294 = vlaneseq
        %v295 = vshrl.u32 %v294, 7
        %v296 = vsub.s32 0, %v295
        %v297 = vrot.slane %v276, %v296
        %v299 = vmul.f32 %v292, %v297
        %v300 = vpack.c.bf16 %v299, %v299
        %v301 = vld [vmem:[%s2] sm:$0xf]
        %v302 = vld [vmem:[%s2 + $0x4] sm:$0xf]
        %v303 = vld [vmem:[%s2 + $0x8] sm:$0xf]
        %v304 = vld [vmem:[%s2 + $0xc] sm:$0xf]
        %v309 = vunpack.c.l.b16 %v301
        %v310 = vunpack.c.l.b16 %v302
        %v311 = vunpack.c.l.b16 %v303
        %v312 = vunpack.c.l.b16 %v304
        %v313 = vpack.c.b16 %v310, %v309
        %v314 = vpack.c.b16 %v312, %v311
        %v318 = vsel %vm278, %v300, 0
        %320 = vmatprep.subr.bf16.mxu0 0
        %321 = vmatpush1.bf16.msra.mxu0 0
        %322 = vmatprep.subr.bf16.mxu0 0
        %323 = vmatpush1.bf16.msra.mxu0 0
        %324 = vmatprep.subr.bf16.mxu0 0
        %325 = vmatpush1.bf16.msra.mxu0 0
        %326 = vmatprep.subr.bf16.mxu0 0
        %327 = vmatpush1.bf16.msra.mxu0 0
        %328 = vmatprep.subr.bf16.mxu0 0
        %329 = vmatpush1.bf16.msra.mxu0 0
        %330 = vmatprep.subr.bf16.mxu0 0
        %331 = vmatpush1.bf16.msra.mxu0 0
        %332 = vmatprep.subr.bf16.mxu0 0
        %333 = vmatpush1.bf16.msra.mxu0 %v314
        %334 = vmatprep.subr.bf16.mxu0 0
        %335 = vmatpush1.bf16.msra.mxu0 %v313
        %336 = vmatprep.subr.bf16.mxu0 0
        %337 = vmatpush2.bf16.msra.mxu0 0
        %338 = vmatprep.subr.bf16.mxu0 0
        %339 = vmatpush2.bf16.msra.mxu0 0
        %340 = vmatprep.subr.bf16.mxu0 0
        %341 = vmatpush2.bf16.msra.mxu0 0
        %342 = vmatprep.subr.bf16.mxu0 0
        %343 = vmatpush2.bf16.msra.mxu0 0
        %344 = vmatprep.subr.bf16.mxu0 0
        %345 = vmatpush2.bf16.msra.mxu0 0
        %346 = vmatprep.subr.bf16.mxu0 0
        %347 = vmatpush2.bf16.msra.mxu0 0
        %348 = vmatprep.subr.bf16.mxu0 0
        %349 = vmatpush2.bf16.msra.mxu0 0
        %350 = vmatprep.subr.bf16.mxu0 0
        %351 = vmatpush2.bf16.msra.mxu0 0
        %352 = vmatprep.mubr.bf16.mxu0 0
        %353 = vmatmul.mubr.bf16.gmra.mxu0 %v318
        %v354 = vpop.f32.mrf.mxu0
        %v355 = vadd.f32 0.0, %v354
        %v356 = vpop.f32.mrf.mxu0
        %v357 = vpop.f32.mrf.mxu0
        %v358 = vpop.f32.mrf.mxu0
        %359 = vdwg.mxu0
        %361 = vrot.lane.b32.xlu0 %v355, 120
        %v362 = vpop.permute.xlu0 %361
        %364 = vrot.lane.b32.xlu0 %v355, 112
        %v365 = vpop.permute.xlu0 %364
        %367 = vrot.lane.b32.xlu0 %v355, 104
        %v368 = vpop.permute.xlu0 %367
        %v370 = vpack.c.bf16 %v355, %v355
        %v371 = vpack.c.bf16 %v362, %v362
        %v372 = vpack.c.bf16 %v365, %v365
        %v373 = vpack.c.bf16 %v368, %v368
        %375 = vrot.lane.b32.xlu0 %v370, 96
        %v376 = vpop.permute.xlu0 %375
        %vm377 = vcmask 64512
        %v379 = vsel %vm377, %v370, 0
        %v382 = vsel %vm377, %v376, 0
        %384 = vmatprep.subr.bf16.mxu0 0
        %385 = vmatpush1.bf16.xpose.msra.mxu0 0
        %386 = vmatprep.subr.bf16.mxu0 0
        %387 = vmatpush1.bf16.xpose.msra.mxu0 0
        %388 = vmatprep.subr.bf16.mxu0 0
        %389 = vmatpush1.bf16.xpose.msra.mxu0 0
        %390 = vmatprep.subr.bf16.mxu0 0
        %391 = vmatpush1.bf16.xpose.msra.mxu0 0
        %392 = vmatprep.subr.bf16.mxu0 0
        %393 = vmatpush1.bf16.xpose.msra.mxu0 0
        %394 = vmatprep.subr.bf16.mxu0 0
        %395 = vmatpush1.bf16.xpose.msra.mxu0 0
        %396 = vmatprep.subr.bf16.mxu0 0
        %397 = vmatpush1.bf16.xpose.msra.mxu0 0
        %398 = vmatprep.subr.bf16.mxu0 0
        %399 = vmatpush1.bf16.xpose.msra.mxu0 %v382
        %400 = vmatprep.subr.bf16.mxu0 0
        %401 = vmatpush2.bf16.xpose.msra.mxu0 0
        %402 = vmatprep.subr.bf16.mxu0 0
        %403 = vmatpush2.bf16.xpose.msra.mxu0 0
        %404 = vmatprep.subr.bf16.mxu0 0
        %405 = vmatpush2.bf16.xpose.msra.mxu0 0
        %406 = vmatprep.subr.bf16.mxu0 0
        %407 = vmatpush2.bf16.xpose.msra.mxu0 0
        %408 = vmatprep.subr.bf16.mxu0 0
        %409 = vmatpush2.bf16.xpose.msra.mxu0 0
        %410 = vmatprep.subr.bf16.mxu0 0
        %411 = vmatpush2.bf16.xpose.msra.mxu0 0
        %412 = vmatprep.subr.bf16.mxu0 0
        %413 = vmatpush2.bf16.xpose.msra.mxu0 0
        %414 = vmatprep.subr.bf16.mxu0 0
        %415 = vmatpush2.bf16.xpose.msra.mxu0 0
        %416 = vmatprep.mubr.bf16.mxu0 0
        %417 = vmatmul.mubr.bf16.gmra.mxu0 %v379
        %v418 = vpop.f32.mrf.mxu0
        %v419 = vadd.f32 0.0, %v418
        %v420 = vpop.f32.mrf.mxu0
        %v421 = vpop.f32.mrf.mxu0
        %v422 = vpop.f32.mrf.mxu0
        %423 = vdwg.mxu0
        %425 = vrot.lane.b32.xlu0 %v371, 96
        %v426 = vpop.permute.xlu0 %425
        %v428 = vsel %vm377, %v371, 0
        %v431 = vsel %vm377, %v426, 0
        %433 = vmatprep.subr.bf16.mxu0 0
        %434 = vmatpush1.bf16.xpose.msra.mxu0 0
        %435 = vmatprep.subr.bf16.mxu0 0
        %436 = vmatpush1.bf16.xpose.msra.mxu0 0
        %437 = vmatprep.subr.bf16.mxu0 0
        %438 = vmatpush1.bf16.xpose.msra.mxu0 0
        %439 = vmatprep.subr.bf16.mxu0 0
        %440 = vmatpush1.bf16.xpose.msra.mxu0 0
        %441 = vmatprep.subr.bf16.mxu0 0
        %442 = vmatpush1.bf16.xpose.msra.mxu0 0
        %443 = vmatprep.subr.bf16.mxu0 0
        %444 = vmatpush1.bf16.xpose.msra.mxu0 0
        %445 = vmatprep.subr.bf16.mxu0 0
        %446 = vmatpush1.bf16.xpose.msra.mxu0 0
        %447 = vmatprep.subr.bf16.mxu0 0
        %448 = vmatpush1.bf16.xpose.msra.mxu0 %v431
        %449 = vmatprep.subr.bf16.mxu0 0
        %450 = vmatpush2.bf16.xpose.msra.mxu0 0
        %451 = vmatprep.subr.bf16.mxu0 0
        %452 = vmatpush2.bf16.xpose.msra.mxu0 0
        %453 = vmatprep.subr.bf16.mxu0 0
        %454 = vmatpush2.bf16.xpose.msra.mxu0 0
        %455 = vmatprep.subr.bf16.mxu0 0
        %456 = vmatpush2.bf16.xpose.msra.mxu0 0
        %457 = vmatprep.subr.bf16.mxu0 0
        %458 = vmatpush2.bf16.xpose.msra.mxu0 0
        %459 = vmatprep.subr.bf16.mxu0 0
        %460 = vmatpush2.bf16.xpose.msra.mxu0 0
        %461 = vmatprep.subr.bf16.mxu0 0
        %462 = vmatpush2.bf16.xpose.msra.mxu0 0
        %463 = vmatprep.subr.bf16.mxu0 0
        %464 = vmatpush2.bf16.xpose.msra.mxu0 0
        %465 = vmatprep.mubr.bf16.mxu0 0
        %466 = vmatmul.mubr.bf16.gmra.mxu0 %v428
        %v467 = vpop.f32.mrf.mxu0
        %v468 = vadd.f32 0.0, %v467
        %v469 = vpop.f32.mrf.mxu0
        %v470 = vpop.f32.mrf.mxu0
        %v471 = vpop.f32.mrf.mxu0
        %472 = vdwg.mxu0
        %474 = vrot.lane.b32.xlu0 %v372, 96
        %v475 = vpop.permute.xlu0 %474
        %v477 = vsel %vm377, %v372, 0
        %v480 = vsel %vm377, %v475, 0
        %482 = vmatprep.subr.bf16.mxu0 0
        %483 = vmatpush1.bf16.xpose.msra.mxu0 0
        %484 = vmatprep.subr.bf16.mxu0 0
        %485 = vmatpush1.bf16.xpose.msra.mxu0 0
        %486 = vmatprep.subr.bf16.mxu0 0
        %487 = vmatpush1.bf16.xpose.msra.mxu0 0
        %488 = vmatprep.subr.bf16.mxu0 0
        %489 = vmatpush1.bf16.xpose.msra.mxu0 0
        %490 = vmatprep.subr.bf16.mxu0 0
        %491 = vmatpush1.bf16.xpose.msra.mxu0 0
        %492 = vmatprep.subr.bf16.mxu0 0
        %493 = vmatpush1.bf16.xpose.msra.mxu0 0
        %494 = vmatprep.subr.bf16.mxu0 0
        %495 = vmatpush1.bf16.xpose.msra.mxu0 0
        %496 = vmatprep.subr.bf16.mxu0 0
        %497 = vmatpush1.bf16.xpose.msra.mxu0 %v480
        %498 = vmatprep.subr.bf16.mxu0 0
        %499 = vmatpush2.bf16.xpose.msra.mxu0 0
        %500 = vmatprep.subr.bf16.mxu0 0
        %501 = vmatpush2.bf16.xpose.msra.mxu0 0
        %502 = vmatprep.subr.bf16.mxu0 0
        %503 = vmatpush2.bf16.xpose.msra.mxu0 0
        %504 = vmatprep.subr.bf16.mxu0 0
        %505 = vmatpush2.bf16.xpose.msra.mxu0 0
        %506 = vmatprep.subr.bf16.mxu0 0
        %507 = vmatpush2.bf16.xpose.msra.mxu0 0
        %508 = vmatprep.subr.bf16.mxu0 0
        %509 = vmatpush2.bf16.xpose.msra.mxu0 0
        %510 = vmatprep.subr.bf16.mxu0 0
        %511 = vmatpush2.bf16.xpose.msra.mxu0 0
        %512 = vmatprep.subr.bf16.mxu0 0
        %513 = vmatpush2.bf16.xpose.msra.mxu0 0
        %514 = vmatprep.mubr.bf16.mxu0 0
        %515 = vmatmul.mubr.bf16.gmra.mxu0 %v477
        %v516 = vpop.f32.mrf.mxu0
        %v517 = vadd.f32 0.0, %v516
        %v518 = vpop.f32.mrf.mxu0
        %v519 = vpop.f32.mrf.mxu0
        %v520 = vpop.f32.mrf.mxu0
        %521 = vdwg.mxu0
        %523 = vrot.lane.b32.xlu0 %v373, 96
        %v524 = vpop.permute.xlu0 %523
        %v526 = vsel %vm377, %v373, 0
        %v529 = vsel %vm377, %v524, 0
        %531 = vmatprep.subr.bf16.mxu0 0
        %532 = vmatpush1.bf16.xpose.msra.mxu0 0
        %533 = vmatprep.subr.bf16.mxu0 0
        %534 = vmatpush1.bf16.xpose.msra.mxu0 0
        %535 = vmatprep.subr.bf16.mxu0 0
        %536 = vmatpush1.bf16.xpose.msra.mxu0 0
        %537 = vmatprep.subr.bf16.mxu0 0
        %538 = vmatpush1.bf16.xpose.msra.mxu0 0
        %539 = vmatprep.subr.bf16.mxu0 0
        %540 = vmatpush1.bf16.xpose.msra.mxu0 0
        %541 = vmatprep.subr.bf16.mxu0 0
        %542 = vmatpush1.bf16.xpose.msra.mxu0 0
        %543 = vmatprep.subr.bf16.mxu0 0
        %544 = vmatpush1.bf16.xpose.msra.mxu0 0
        %545 = vmatprep.subr.bf16.mxu0 0
        %546 = vmatpush1.bf16.xpose.msra.mxu0 %v529
        %547 = vmatprep.subr.bf16.mxu0 0
        %548 = vmatpush2.bf16.xpose.msra.mxu0 0
        %549 = vmatprep.subr.bf16.mxu0 0
        %550 = vmatpush2.bf16.xpose.msra.mxu0 0
        %551 = vmatprep.subr.bf16.mxu0 0
        %552 = vmatpush2.bf16.xpose.msra.mxu0 0
        %553 = vmatprep.subr.bf16.mxu0 0
        %554 = vmatpush2.bf16.xpose.msra.mxu0 0
        %555 = vmatprep.subr.bf16.mxu0 0
        %556 = vmatpush2.bf16.xpose.msra.mxu0 0
        %557 = vmatprep.subr.bf16.mxu0 0
        %558 = vmatpush2.bf16.xpose.msra.mxu0 0
        %559 = vmatprep.subr.bf16.mxu0 0
        %560 = vmatpush2.bf16.xpose.msra.mxu0 0
        %561 = vmatprep.subr.bf16.mxu0 0
        %562 = vmatpush2.bf16.xpose.msra.mxu0 0
        %563 = vmatprep.mubr.bf16.mxu0 0
        %564 = vmatmul.mubr.bf16.gmra.mxu0 %v526
        %v565 = vpop.f32.mrf.mxu0
        %v566 = vadd.f32 0.0, %v565
        %v567 = vpop.f32.mrf.mxu0
        %v568 = vpop.f32.mrf.mxu0
        %v569 = vpop.f32.mrf.mxu0
        %570 = vdwg.mxu0
        %v571 = vlaneseq
        %v572 = vshrl.u32 %v571, 7
        %v573 = vlaneseq
        %v574 = vand.u32 %v573, 127
        %vm575 = vcmp.le.s32.totalorder %v574, %v572
        %v576 = vsel %vm575, 1, 0
        %vm577 = vcmp.eq.s32.totalorder %v576, 1
        %v578 = vsel %vm577, %v419, -1e+30
        %v579 = vsel %vm577, %v468, -1e+30
        %v580 = vsel %vm577, %v517, -1e+30
        %v581 = vsel %vm577, %v566, -1e+30
        %v582 = vsel %vm377, %v578, -inf
        %583 = vmax.xlane.f32.xlu0 %v582
        %v584 = vpop.xlane.xlu0 %583
        %v585 = vsel %vm377, %v579, -inf
        %586 = vmax.xlane.f32.xlu0 %v585
        %v587 = vpop.xlane.xlu0 %586
        %v588 = vsel %vm377, %v580, -inf
        %589 = vmax.xlane.f32.xlu0 %v588
        %v590 = vpop.xlane.xlu0 %589
        %v591 = vsel %vm377, %v581, -inf
        %592 = vmax.xlane.f32.xlu0 %v591
        %v593 = vpop.xlane.xlu0 %592
        %v594 = vsub.f32 %v578, %v584
        %v595 = vsub.f32 %v579, %v587
        %v596 = vsub.f32 %v580, %v590
        %v597 = vsub.f32 %v581, %v593
        %v598 = vmul.f32 %v594, 1.442695
        %v599 = vpow.pop %v598
        %v600 = vmul.f32 %v595, 1.442695
        %v601 = vpow.pop %v600
        %v602 = vmul.f32 %v596, 1.442695
        %v603 = vpow.pop %v602
        %v604 = vmul.f32 %v597, 1.442695
        %v605 = vpow.pop %v604
        %v606 = vsel %vm377, %v599, 0.0
        %607 = vadd.xlane.f32.xlu0 %v606
        %v608 = vpop.xlane.xlu0 %607
        %v609 = vsel %vm377, %v601, 0.0
        %610 = vadd.xlane.f32.xlu0 %v609
        %v611 = vpop.xlane.xlu0 %610
        %v612 = vsel %vm377, %v603, 0.0
        %613 = vadd.xlane.f32.xlu0 %v612
        %v614 = vpop.xlane.xlu0 %613
        %v615 = vsel %vm377, %v605, 0.0
        %616 = vadd.xlane.f32.xlu0 %v615
        %v617 = vpop.xlane.xlu0 %616
        %v618 = vrcp.pop %v608
        %v619 = vrcp.pop %v611
        %v620 = vrcp.pop %v614
        %v621 = vrcp.pop %v617
        %v622 = vmul.f32 %v599, %v618
        %v623 = vmul.f32 %v601, %v619
        %v624 = vmul.f32 %v603, %v620
        %v625 = vmul.f32 %v605, %v621
        %v626 = vpack.c.bf16 %v622, %v622
        %v627 = vpack.c.bf16 %v623, %v623
        %v628 = vpack.c.bf16 %v624, %v624
        %v629 = vpack.c.bf16 %v625, %v625
        %630 = vrot.lane.b32.xlu0 %v370, 64
        %v631 = vpop.permute.xlu0 %630
        %v633 = vsel %vm377, %v626, 0
        %vm635 = vcmask 1043456
        %v637 = vsel %vm635, %v631, 0
        %639 = vmatprep.subr.bf16.mxu0 0
        %640 = vmatpush1.bf16.msra.mxu0 0
        %641 = vmatprep.subr.bf16.mxu0 0
        %642 = vmatpush1.bf16.msra.mxu0 0
        %643 = vmatprep.subr.bf16.mxu0 0
        %644 = vmatpush1.bf16.msra.mxu0 0
        %645 = vmatprep.subr.bf16.mxu0 0
        %646 = vmatpush1.bf16.msra.mxu0 0
        %647 = vmatprep.subr.bf16.mxu0 0
        %648 = vmatpush1.bf16.msra.mxu0 0
        %649 = vmatprep.subr.bf16.mxu0 0
        %650 = vmatpush1.bf16.msra.mxu0 0
        %651 = vmatprep.subr.bf16.mxu0 0
        %652 = vmatpush1.bf16.msra.mxu0 0
        %653 = vmatprep.subr.bf16.mxu0 0
        %654 = vmatpush1.bf16.msra.mxu0 %v637
        %655 = vmatprep.subr.bf16.mxu0 0
        %656 = vmatpush2.bf16.msra.mxu0 0
        %657 = vmatprep.subr.bf16.mxu0 0
        %658 = vmatpush2.bf16.msra.mxu0 0
        %659 = vmatprep.subr.bf16.mxu0 0
        %660 = vmatpush2.bf16.msra.mxu0 0
        %661 = vmatprep.subr.bf16.mxu0 0
        %662 = vmatpush2.bf16.msra.mxu0 0
        %663 = vmatprep.subr.bf16.mxu0 0
        %664 = vmatpush2.bf16.msra.mxu0 0
        %665 = vmatprep.subr.bf16.mxu0 0
        %666 = vmatpush2.bf16.msra.mxu0 0
        %667 = vmatprep.subr.bf16.mxu0 0
        %668 = vmatpush2.bf16.msra.mxu0 0
        %669 = vmatprep.subr.bf16.mxu0 0
        %670 = vmatpush2.bf16.msra.mxu0 0
        %671 = vmatprep.mubr.bf16.mxu0 0
        %672 = vmatmul.mubr.bf16.gmra.mxu0 %v633
        %v673 = vpop.f32.mrf.mxu0
        %v674 = vadd.f32 0.0, %v673
        %v675 = vpop.f32.mrf.mxu0
        %v676 = vpop.f32.mrf.mxu0
        %v677 = vpop.f32.mrf.mxu0
        %678 = vdwg.mxu0
        %679 = vrot.lane.b32.xlu0 %v371, 64
        %v680 = vpop.permute.xlu0 %679
        %v682 = vsel %vm377, %v627, 0
        %v685 = vsel %vm635, %v680, 0
        %687 = vmatprep.subr.bf16.mxu0 0
        %688 = vmatpush1.bf16.msra.mxu0 0
        %689 = vmatprep.subr.bf16.mxu0 0
        %690 = vmatpush1.bf16.msra.mxu0 0
        %691 = vmatprep.subr.bf16.mxu0 0
        %692 = vmatpush1.bf16.msra.mxu0 0
        %693 = vmatprep.subr.bf16.mxu0 0
        %694 = vmatpush1.bf16.msra.mxu0 0
        %695 = vmatprep.subr.bf16.mxu0 0
        %696 = vmatpush1.bf16.msra.mxu0 0
        %697 = vmatprep.subr.bf16.mxu0 0
        %698 = vmatpush1.bf16.msra.mxu0 0
        %699 = vmatprep.subr.bf16.mxu0 0
        %700 = vmatpush1.bf16.msra.mxu0 0
        %701 = vmatprep.subr.bf16.mxu0 0
        %702 = vmatpush1.bf16.msra.mxu0 %v685
        %703 = vmatprep.subr.bf16.mxu0 0
        %704 = vmatpush2.bf16.msra.mxu0 0
        %705 = vmatprep.subr.bf16.mxu0 0
        %706 = vmatpush2.bf16.msra.mxu0 0
        %707 = vmatprep.subr.bf16.mxu0 0
        %708 = vmatpush2.bf16.msra.mxu0 0
        %709 = vmatprep.subr.bf16.mxu0 0
        %710 = vmatpush2.bf16.msra.mxu0 0
        %711 = vmatprep.subr.bf16.mxu0 0
        %712 = vmatpush2.bf16.msra.mxu0 0
        %713 = vmatprep.subr.bf16.mxu0 0
        %714 = vmatpush2.bf16.msra.mxu0 0
        %715 = vmatprep.subr.bf16.mxu0 0
        %716 = vmatpush2.bf16.msra.mxu0 0
        %717 = vmatprep.subr.bf16.mxu0 0
        %718 = vmatpush2.bf16.msra.mxu0 0
        %719 = vmatprep.mubr.bf16.mxu0 0
        %720 = vmatmul.mubr.bf16.gmra.mxu0 %v682
        %v721 = vpop.f32.mrf.mxu0
        %v722 = vadd.f32 0.0, %v721
        %v723 = vpop.f32.mrf.mxu0
        %v724 = vpop.f32.mrf.mxu0
        %v725 = vpop.f32.mrf.mxu0
        %726 = vdwg.mxu0
        %727 = vrot.lane.b32.xlu0 %v372, 64
        %v728 = vpop.permute.xlu0 %727
        %v730 = vsel %vm377, %v628, 0
        %v733 = vsel %vm635, %v728, 0
        %735 = vmatprep.subr.bf16.mxu0 0
        %736 = vmatpush1.bf16.msra.mxu0 0
        %737 = vmatprep.subr.bf16.mxu0 0
        %738 = vmatpush1.bf16.msra.mxu0 0
        %739 = vmatprep.subr.bf16.mxu0 0
        %740 = vmatpush1.bf16.msra.mxu0 0
        %741 = vmatprep.subr.bf16.mxu0 0
        %742 = vmatpush1.bf16.msra.mxu0 0
        %743 = vmatprep.subr.bf16.mxu0 0
        %744 = vmatpush1.bf16.msra.mxu0 0
        %745 = vmatprep.subr.bf16.mxu0 0
        %746 = vmatpush1.bf16.msra.mxu0 0
        %747 = vmatprep.subr.bf16.mxu0 0
        %748 = vmatpush1.bf16.msra.mxu0 0
        %749 = vmatprep.subr.bf16.mxu0 0
        %750 = vmatpush1.bf16.msra.mxu0 %v733
        %751 = vmatprep.subr.bf16.mxu0 0
        %752 = vmatpush2.bf16.msra.mxu0 0
        %753 = vmatprep.subr.bf16.mxu0 0
        %754 = vmatpush2.bf16.msra.mxu0 0
        %755 = vmatprep.subr.bf16.mxu0 0
        %756 = vmatpush2.bf16.msra.mxu0 0
        %757 = vmatprep.subr.bf16.mxu0 0
        %758 = vmatpush2.bf16.msra.mxu0 0
        %759 = vmatprep.subr.bf16.mxu0 0
        %760 = vmatpush2.bf16.msra.mxu0 0
        %761 = vmatprep.subr.bf16.mxu0 0
        %762 = vmatpush2.bf16.msra.mxu0 0
        %763 = vmatprep.subr.bf16.mxu0 0
        %764 = vmatpush2.bf16.msra.mxu0 0
        %765 = vmatprep.subr.bf16.mxu0 0
        %766 = vmatpush2.bf16.msra.mxu0 0
        %767 = vmatprep.mubr.bf16.mxu0 0
        %768 = vmatmul.mubr.bf16.gmra.mxu0 %v730
        %v769 = vpop.f32.mrf.mxu0
        %v770 = vadd.f32 0.0, %v769
        %v771 = vpop.f32.mrf.mxu0
        %v772 = vpop.f32.mrf.mxu0
        %v773 = vpop.f32.mrf.mxu0
        %774 = vdwg.mxu0
        %775 = vrot.lane.b32.xlu0 %v373, 64
        %v776 = vpop.permute.xlu0 %775
        %v778 = vsel %vm377, %v629, 0
        %v781 = vsel %vm635, %v776, 0
        %783 = vmatprep.subr.bf16.mxu0 0
        %784 = vmatpush1.bf16.msra.mxu0 0
        %785 = vmatprep.subr.bf16.mxu0 0
        %786 = vmatpush1.bf16.msra.mxu0 0
        %787 = vmatprep.subr.bf16.mxu0 0
        %788 = vmatpush1.bf16.msra.mxu0 0
        %789 = vmatprep.subr.bf16.mxu0 0
        %790 = vmatpush1.bf16.msra.mxu0 0
        %791 = vmatprep.subr.bf16.mxu0 0
        %792 = vmatpush1.bf16.msra.mxu0 0
        %793 = vmatprep.subr.bf16.mxu0 0
        %794 = vmatpush1.bf16.msra.mxu0 0
        %795 = vmatprep.subr.bf16.mxu0 0
        %796 = vmatpush1.bf16.msra.mxu0 0
        %797 = vmatprep.subr.bf16.mxu0 0
        %798 = vmatpush1.bf16.msra.mxu0 %v781
        %799 = vmatprep.subr.bf16.mxu0 0
        %800 = vmatpush2.bf16.msra.mxu0 0
        %801 = vmatprep.subr.bf16.mxu0 0
        %802 = vmatpush2.bf16.msra.mxu0 0
        %803 = vmatprep.subr.bf16.mxu0 0
        %804 = vmatpush2.bf16.msra.mxu0 0
        %805 = vmatprep.subr.bf16.mxu0 0
        %806 = vmatpush2.bf16.msra.mxu0 0
        %807 = vmatprep.subr.bf16.mxu0 0
        %808 = vmatpush2.bf16.msra.mxu0 0
        %809 = vmatprep.subr.bf16.mxu0 0
        %810 = vmatpush2.bf16.msra.mxu0 0
        %811 = vmatprep.subr.bf16.mxu0 0
        %812 = vmatpush2.bf16.msra.mxu0 0
        %813 = vmatprep.subr.bf16.mxu0 0
        %814 = vmatpush2.bf16.msra.mxu0 0
        %815 = vmatprep.mubr.bf16.mxu0 0
        %816 = vmatmul.mubr.bf16.gmra.mxu0 %v778
        %v817 = vpop.f32.mrf.mxu0
        %v818 = vadd.f32 0.0, %v817
        %v819 = vpop.f32.mrf.mxu0
        %v820 = vpop.f32.mrf.mxu0
        %v821 = vpop.f32.mrf.mxu0
        %822 = vdwg.mxu0
        %823 = vst.msk [vmem:[#allocation2] sm:$0xff] %vm377, %v674
        %825 = vrot.lane.b32.xlu0 %v722, 8
        %v826 = vpop.permute.xlu0 %825
        %vm828 = vcmask 130112
        %829 = vst.msk [vmem:[#allocation2] sm:$0xff] %vm828, %v826
        %831 = vrot.lane.b32.xlu0 %v770, 16
        %v832 = vpop.permute.xlu0 %831
        %vm834 = vcmask 195712
        %835 = vst.msk [vmem:[#allocation2] sm:$0xff] %vm834, %v832
        %837 = vrot.lane.b32.xlu0 %v818, 24
        %v838 = vpop.permute.xlu0 %837
        %vm840 = vcmask 261312
        %841 = vst.msk [vmem:[#allocation2] sm:$0xff] %vm840, %v838
        %v842 = vld [vmem:[#allocation2] sm:$0xff]
        %v843 = vpack.c.bf16 %v842, %v842
        %v844 = vld [vmem:[%s3] sm:$0xf]
        %v845 = vld [vmem:[%s3 + $0x4] sm:$0xf]
        %v846 = vld [vmem:[%s3 + $0x8] sm:$0xf]
        %v847 = vld [vmem:[%s3 + $0xc] sm:$0xf]
        %v852 = vunpack.c.l.b16 %v844
        %v853 = vunpack.c.l.b16 %v845
        %v854 = vunpack.c.l.b16 %v846
        %v855 = vunpack.c.l.b16 %v847
        %v856 = vpack.c.b16 %v853, %v852
        %v857 = vpack.c.b16 %v855, %v854
        %v861 = vsel %vm278, %v843, 0
        %863 = vmatprep.subr.bf16.mxu0 0
        %864 = vmatpush1.bf16.msra.mxu0 0
        %865 = vmatprep.subr.bf16.mxu0 0
        %866 = vmatpush1.bf16.msra.mxu0 0
        %867 = vmatprep.subr.bf16.mxu0 0
        %868 = vmatpush1.bf16.msra.mxu0 0
        %869 = vmatprep.subr.bf16.mxu0 0
        %870 = vmatpush1.bf16.msra.mxu0 0
        %871 = vmatprep.subr.bf16.mxu0 0
        %872 = vmatpush1.bf16.msra.mxu0 0
        %873 = vmatprep.subr.bf16.mxu0 0
        %874 = vmatpush1.bf16.msra.mxu0 0
        %875 = vmatprep.subr.bf16.mxu0 0
        %876 = vmatpush1.bf16.msra.mxu0 %v857
        %877 = vmatprep.subr.bf16.mxu0 0
        %878 = vmatpush1.bf16.msra.mxu0 %v856
        %879 = vmatprep.subr.bf16.mxu0 0
        %880 = vmatpush2.bf16.msra.mxu0 0
        %881 = vmatprep.subr.bf16.mxu0 0
        %882 = vmatpush2.bf16.msra.mxu0 0
        %883 = vmatprep.subr.bf16.mxu0 0
        %884 = vmatpush2.bf16.msra.mxu0 0
        %885 = vmatprep.subr.bf16.mxu0 0
        %886 = vmatpush2.bf16.msra.mxu0 0
        %887 = vmatprep.subr.bf16.mxu0 0
        %888 = vmatpush2.bf16.msra.mxu0 0
        %889 = vmatprep.subr.bf16.mxu0 0
        %890 = vmatpush2.bf16.msra.mxu0 0
        %891 = vmatprep.subr.bf16.mxu0 0
        %892 = vmatpush2.bf16.msra.mxu0 0
        %893 = vmatprep.subr.bf16.mxu0 0
        %894 = vmatpush2.bf16.msra.mxu0 0
        %895 = vmatprep.mubr.bf16.mxu0 0
        %896 = vmatmul.mubr.bf16.gmra.mxu0 %v861
        %v897 = vpop.f32.mrf.mxu0
        %v898 = vadd.f32 0.0, %v897
        %v899 = vpop.f32.mrf.mxu0
        %v900 = vpop.f32.mrf.mxu0
        %v901 = vpop.f32.mrf.mxu0
        %902 = vdwg.mxu0
        %v903 = vadd.f32 %v275, %v898
        %v904 = vsel %vm278, %v903, 0.0
        %905 = vadd.xlane.f32.xlu0 %v904
        %v906 = vpop.xlane.xlu0 %905
        %v907 = vmul.f32 %v906, %v282
        %v908 = vsub.f32 %v903, %v907
        %v909 = vmul.f32 %v908, %v908
        %v910 = vsel %vm278, %v909, 0.0
        %911 = vadd.xlane.f32.xlu0 %v910
        %v912 = vpop.xlane.xlu0 %911
        %v913 = vmul.f32 %v912, %v282
        %v914 = vadd.f32 %v913, 1e-05
        %v915 = vrsqrt.pop %v914
        %v916 = vmul.f32 %v908, %v915
        %v918 = vlaneseq
        %v919 = vshrl.u32 %v918, 7
        %v920 = vsub.s32 0, %v919
        %v921 = vrot.slane %v277, %v920
        %v923 = vmul.f32 %v916, %v921
        %v924 = vpack.c.bf16 %v923, %v923
        %v925 = vld [vmem:[%s5] sm:$0xf]
        %v926 = vld [vmem:[%s5 + $0x4] sm:$0xf]
        %v927 = vld [vmem:[%s5 + $0x8] sm:$0xf]
        %v928 = vld [vmem:[%s5 + $0xc] sm:$0xf]
        %v933 = vunpack.c.l.b16 %v925
        %v934 = vunpack.c.l.b16 %v926
        %v935 = vunpack.c.l.b16 %v927
        %v936 = vunpack.c.l.b16 %v928
        %v937 = vpack.c.b16 %v934, %v933
        %v938 = vpack.c.b16 %v936, %v935
        %v942 = vsel %vm278, %v924, 0
        %944 = vmatprep.subr.bf16.mxu0 0
        %945 = vmatpush1.bf16.msra.mxu0 0
        %946 = vmatprep.subr.bf16.mxu0 0
        %947 = vmatpush1.bf16.msra.mxu0 0
        %948 = vmatprep.subr.bf16.mxu0 0
        %949 = vmatpush1.bf16.msra.mxu0 0
        %950 = vmatprep.subr.bf16.mxu0 0
        %951 = vmatpush1.bf16.msra.mxu0 0
        %952 = vmatprep.subr.bf16.mxu0 0
        %953 = vmatpush1.bf16.msra.mxu0 0
        %954 = vmatprep.subr.bf16.mxu0 0
        %955 = vmatpush1.bf16.msra.mxu0 0
        %956 = vmatprep.subr.bf16.mxu0 0
        %957 = vmatpush1.bf16.msra.mxu0 %v938
        %958 = vmatprep.subr.bf16.mxu0 0
        %959 = vmatpush1.bf16.msra.mxu0 %v937
        %960 = vmatprep.subr.bf16.mxu0 0
        %961 = vmatpush2.bf16.msra.mxu0 0
        %962 = vmatprep.subr.bf16.mxu0 0
        %963 = vmatpush2.bf16.msra.mxu0 0
        %964 = vmatprep.subr.bf16.mxu0 0
        %965 = vmatpush2.bf16.msra.mxu0 0
        %966 = vmatprep.subr.bf16.mxu0 0
        %967 = vmatpush2.bf16.msra.mxu0 0
        %968 = vmatprep.subr.bf16.mxu0 0
        %969 = vmatpush2.bf16.msra.mxu0 0
        %970 = vmatprep.subr.bf16.mxu0 0
        %971 = vmatpush2.bf16.msra.mxu0 0
        %972 = vmatprep.subr.bf16.mxu0 0
        %973 = vmatpush2.bf16.msra.mxu0 0
        %974 = vmatprep.subr.bf16.mxu0 0
        %975 = vmatpush2.bf16.msra.mxu0 0
        %976 = vmatprep.mubr.bf16.mxu0 0
        %977 = vmatmul.mubr.bf16.gmra.mxu0 %v942
        %v978 = vpop.f32.mrf.mxu0
        %v979 = vadd.f32 0.0, %v978
        %v980 = vpop.f32.mrf.mxu0
        %v981 = vpop.f32.mrf.mxu0
        %v982 = vpop.f32.mrf.mxu0
        %983 = vdwg.mxu0
        %v984 = vmul.f32 %v979, 0.5
        %v985 = vmul.f32 %v979, 0.70710677
        %v986 = verf.f32.pop %v985
        %v987 = vadd.f32 %v986, 1.0
        %v988 = vmul.f32 %v984, %v987
        %v989 = vpack.c.bf16 %v988, %v988
        %v990 = vld [vmem:[%s6] sm:$0xf]
        %v991 = vld [vmem:[%s6 + $0x4] sm:$0xf]
        %v992 = vld [vmem:[%s6 + $0x8] sm:$0xf]
        %v993 = vld [vmem:[%s6 + $0xc] sm:$0xf]
        %v994 = vld [vmem:[%s6 + $0x10] sm:$0xf]
        %v995 = vld [vmem:[%s6 + $0x14] sm:$0xf]
        %v996 = vld [vmem:[%s6 + $0x18] sm:$0xf]
        %v997 = vld [vmem:[%s6 + $0x1c] sm:$0xf]
        %v998 = vld [vmem:[%s6 + $0x20] sm:$0xf]
        %v999 = vld [vmem:[%s6 + $0x24] sm:$0xf]
        %v1000 = vld [vmem:[%s6 + $0x28] sm:$0xf]
        %v1001 = vld [vmem:[%s6 + $0x2c] sm:$0xf]
        %v1002 = vld [vmem:[%s6 + $0x30] sm:$0xf]
        %v1003 = vld [vmem:[%s6 + $0x34] sm:$0xf]
        %v1004 = vld [vmem:[%s6 + $0x38] sm:$0xf]
        %v1005 = vld [vmem:[%s6 + $0x3c] sm:$0xf]
        %v1022 = vunpack.c.l.b16 %v990
        %v1023 = vunpack.c.l.b16 %v991
        %v1024 = vunpack.c.l.b16 %v992
        %v1025 = vunpack.c.l.b16 %v993
        %v1026 = vunpack.c.l.b16 %v994
        %v1027 = vunpack.c.l.b16 %v995
        %v1028 = vunpack.c.l.b16 %v996
        %v1029 = vunpack.c.l.b16 %v997
        %v1030 = vunpack.c.l.b16 %v998
        %v1031 = vunpack.c.l.b16 %v999
        %v1032 = vunpack.c.l.b16 %v1000
        %v1033 = vunpack.c.l.b16 %v1001
        %v1034 = vunpack.c.l.b16 %v1002
        %v1035 = vunpack.c.l.b16 %v1003
        %v1036 = vunpack.c.l.b16 %v1004
        %v1037 = vunpack.c.l.b16 %v1005
        %v1038 = vpack.c.b16 %v1023, %v1022
        %v1039 = vpack.c.b16 %v1025, %v1024
        %v1040 = vpack.c.b16 %v1027, %v1026
        %v1041 = vpack.c.b16 %v1029, %v1028
        %v1042 = vpack.c.b16 %v1031, %v1030
        %v1043 = vpack.c.b16 %v1033, %v1032
        %v1044 = vpack.c.b16 %v1035, %v1034
        %v1045 = vpack.c.b16 %v1037, %v1036
        %1054 = vmatprep.subr.bf16.mxu0 0
        %1055 = vmatpush1.bf16.msra.mxu0 %v1045
        %1056 = vmatprep.subr.bf16.mxu0 0
        %1057 = vmatpush1.bf16.msra.mxu0 %v1044
        %1058 = vmatprep.subr.bf16.mxu0 0
        %1059 = vmatpush1.bf16.msra.mxu0 %v1043
        %1060 = vmatprep.subr.bf16.mxu0 0
        %1061 = vmatpush1.bf16.msra.mxu0 %v1042
        %1062 = vmatprep.subr.bf16.mxu0 0
        %1063 = vmatpush1.bf16.msra.mxu0 %v1041
        %1064 = vmatprep.subr.bf16.mxu0 0
        %1065 = vmatpush1.bf16.msra.mxu0 %v1040
        %1066 = vmatprep.subr.bf16.mxu0 0
        %1067 = vmatpush1.bf16.msra.mxu0 %v1039
        %1068 = vmatprep.subr.bf16.mxu0 0
        %1069 = vmatpush1.bf16.msra.mxu0 %v1038
        %1070 = vmatprep.subr.bf16.mxu0 0
        %1071 = vmatpush2.bf16.msra.mxu0 0
        %1072 = vmatprep.subr.bf16.mxu0 0
        %1073 = vmatpush2.bf16.msra.mxu0 0
        %1074 = vmatprep.subr.bf16.mxu0 0
        %1075 = vmatpush2.bf16.msra.mxu0 0
        %1076 = vmatprep.subr.bf16.mxu0 0
        %1077 = vmatpush2.bf16.msra.mxu0 0
        %1078 = vmatprep.subr.bf16.mxu0 0
        %1079 = vmatpush2.bf16.msra.mxu0 0
        %1080 = vmatprep.subr.bf16.mxu0 0
        %1081 = vmatpush2.bf16.msra.mxu0 0
        %1082 = vmatprep.subr.bf16.mxu0 0
        %1083 = vmatpush2.bf16.msra.mxu0 0
        %1084 = vmatprep.subr.bf16.mxu0 0
        %1085 = vmatpush2.bf16.msra.mxu0 0
        %1086 = vmatprep.mubr.bf16.mxu0 0
        %1087 = vmatmul.mubr.bf16.gmra.mxu0 %v989
        %v1088 = vpop.f32.mrf.mxu0
        %v1089 = vadd.f32 0.0, %v1088
        %v1090 = vpop.f32.mrf.mxu0
        %v1091 = vpop.f32.mrf.mxu0
        %v1092 = vpop.f32.mrf.mxu0
        %1093 = vdwg.mxu0
        %v1094 = vadd.f32 %v903, %v1089
        %1095 = vst.msk [vmem:[%s269] sm:$0xff] %vm278, %v1094
        %s1096 = sand.u32 %s181, 1
        %s1097 = scalar_lea.sflag [#allocation4], %s1096
        %s1098 = sand.u32 %s181, 1
        %s1099 = smul.addr %s1098, 8
        %s1100 = scalar_lea.vmem [#allocation3], %s1099
        // Predicated region
        $region49: #{tpu_custom_call.1} parent=47 // pred_check
          %p1101 = pneg %p191
        $region50: #{tpu_custom_call.1} parent=47 // pred_check_branch
          %1103 = sbr.rel (%p1101) target = $region52
        $region51: #{tpu_custom_call.1} parent=47 // pred_region
          %s1105 = ssub.s32 128, 128
          %1106 = vsyncadd %s1097, %s1105
          %s1107 = smul.addr %s21, 128
          %s1108 = scalar_lea.hbm %s7, %s1107
          %s1110 = sshll.u32 %s1100, 4
          %s1111 = int_to_ptr.vmem [resolvable:$true] %s1110
          %1113 = dma.vmem_to_hbm [thread:$0]  %s1111, 128, %s1108, %s1097
        $region52: #{tpu_custom_call.1} parent=47 // pred_fallthru
          _
      $region48: #{tpu_custom_call.1} parent=5 // pred_fallthru
        _
      %p1114 = scmp.le.s32.totalorder 2, %s16
      // Predicated region
      $region53: #{tpu_custom_call.1} parent=5 // pred_check
        %p1115 = pneg %p1114
      $region54: #{tpu_custom_call.1} parent=5 // pred_check_branch
        %1117 = sbr.rel (%p1115) target = $region56
      $region55: #{tpu_custom_call.1} parent=5 // pred_region
        %s1118 = ssub.s32 %s16, 2
        // Predicated region
        $region57: #{tpu_custom_call.1} parent=55 // pred_check
          %p1119 = pneg %p197
        $region58: #{tpu_custom_call.1} parent=55 // pred_check_branch
          %1121 = sbr.rel (%p1119) target = $region60
        $region59: #{tpu_custom_call.1} parent=55 // pred_region
          %s1122 = sand.u32 %s182, 1
          %s1123 = scalar_lea.sflag [#allocation4], %s1122
          %s1124 = sand.u32 %s182, 1
          %s1125 = smul.addr %s1124, 8
          %s1126 = scalar_lea.vmem [#allocation3], %s1125
          %1127 = dma.done %s1123, 128
        $region60: #{tpu_custom_call.1} parent=55 // pred_fallthru
          _
      $region56: #{tpu_custom_call.1} parent=5 // pred_fallthru
        _
    $region6: #{tpu_custom_call.1} parent=1 // loop_footer
      %s20 = sadd.s32 1, %s16
    $region7: #{tpu_custom_call.1} parent=1 // loop_footer_branch
      %15 = sbr.rel target = $region3
    $region8: #{tpu_custom_call.1} parent=1 // loop_exit
      _
    %1128 = vsyncpa [#allocation4], 1
    %s1129 = scalar_lea.sflag [#allocation4], 1
    %1130 = vsyncpa %s1129, 1

</llo_original>
